<compile_context>
chip_gen: v7x
topology: tpu7x:2x2x1
jax: 0.10.0
libtpu: 0.0.40
codegen_flags: <defaults>
</compile_context>

<pallas_src>
import jax
import jax.numpy as jnp
import numpy as np
from jax.experimental import pallas as pl
from jax.experimental.pallas import tpu as pltpu


# ----------------------------- Pallas kernel -------------------------------

def _affine_kernel(x_ref, a_ref, b_ref, o_ref):
    # x_ref / o_ref : (TB, TL) blocks of the flattened (N*C, H*W) data.
    # a_ref / b_ref : (TB, 1) f32 per-row coefficients, broadcast over lanes.
    # f32 compute keeps v5e correct (no bf16 VALU); kernel is HBM-bound anyway.
    x = x_ref[...].astype(jnp.float32)
    y = x * a_ref[...] + b_ref[...]
    o_ref[...] = y.astype(o_ref.dtype)


# --------------------------- tiling / VMEM budget ---------------------------

def _round_up(x, m):
    return ((x + m - 1) // m) * m


def _vmem_limits():
    """(per-block byte budget, vmem_limit_bytes) from the chip's real VMEM."""
    vmem = 64 * 1024 * 1024  # conservative fallback (v7x per-TC VMEM)
    try:
        info = pltpu.get_tpu_info()
        cap = int(getattr(info, "vmem_capacity_bytes", vmem))
        if cap > 0:
            vmem = cap
    except Exception:
        pass
    # Live VMEM ~= 4 x block (double-buffered input + output) + tiny params.
    block_budget = max(4 * 1024 * 1024, vmem // 8)
    vmem_limit = min(int(vmem * 3 // 4), 96 * 1024 * 1024)
    return block_budget, vmem_limit


def _choose_tiles(rows, hw, itemsize, budget):
    """Pick (TB, TL) for the 2-D (rows, hw) view.

    TL defaults to the full H*W row (one contiguous DMA, unmasked stores) and
    only splits (to a multiple of 128) when even 8 full rows exceed `budget`.
    TB is a multiple of 8 sized by the byte budget, or the full row count."""
    tl = hw
    per_row = max(1, tl * itemsize)
    tb = (budget // per_row) // 8 * 8
    if tb >= rows:
        tb = rows                                  # whole row range, one tile
    elif tb < 8:
        tb = min(8, rows)                          # minimal rows, split lanes
        if hw > 128:
            tl = min(hw, max(128, (budget // (tb * itemsize)) // 128 * 128))
    return tb, tl


def _ensure_two_blocks(rows, hw, tb, tl, itemsize, min_bytes=2 * 1024 * 1024):
    """v7x has 2 TensorCores: a big-enough problem should yield >= 2 blocks."""
    if pl.cdiv(rows, tb) * pl.cdiv(hw, tl) > 1:
        return tb, tl
    if rows * hw * itemsize < min_bytes:
        return tb, tl
    if rows >= 16:
        tb = _round_up(pl.cdiv(rows, 2), 8)        # prefer splitting rows
    elif hw >= 256:
        tl = _round_up(pl.cdiv(hw, 2), 128)
    return tb, tl


# ------------------------------ fused affine --------------------------------

def _apply_channel_affine(data, a, b, out_dtype=None, block_budget=None):
    """data: (N, C, H, W); a, b: (C,) f32.  y[:, c] = data[:, c]*a[c] + b[c].

    Single pallas_call over a dense 2-D (N*C, H*W) view."""
    N, C, H, W = data.shape
    R, HW = N * C, H * W
    out_dtype = data.dtype if out_dtype is None else out_dtype

    x = data.reshape(R, HW)                        # metadata-only (row-major)
    a_col = jnp.broadcast_to(
        jnp.asarray(a, jnp.float32).reshape(1, C), (N, C)).reshape(R, 1)
    b_col = jnp.broadcast_to(
        jnp.asarray(b, jnp.float32).reshape(1, C), (N, C)).reshape(R, 1)

    default_budget, vmem_limit = _vmem_limits()
    budget = default_budget if block_budget is None else block_budget
    itemsize = max(jnp.dtype(data.dtype).itemsize, jnp.dtype(out_dtype).itemsize)

    tb, tl = _choose_tiles(R, HW, itemsize, budget)
    tb, tl = _ensure_two_blocks(R, HW, tb, tl, itemsize)
    grid = (pl.cdiv(R, tb), pl.cdiv(HW, tl))       # ragged edges are masked

    # TODO(synk): expose input_output_aliases={0: 0} for callers that donate
    # the raw input buffer (dtypes must match).
    out = pl.pallas_call(
        _affine_kernel,
        out_shape=jax.ShapeDtypeStruct((R, HW), out_dtype),
        grid=grid,
        in_specs=[
            pl.BlockSpec((tb, tl), lambda i, j: (i, j)),
            pl.BlockSpec((tb, 1), lambda i, j: (i, 0)),
            pl.BlockSpec((tb, 1), lambda i, j: (i, 0)),
        ],
        out_specs=pl.BlockSpec((tb, tl), lambda i, j: (i, j)),
        compiler_params=pltpu.CompilerParams(
            dimension_semantics=("parallel", "parallel"),
            vmem_limit_bytes=vmem_limit),
    )(x, a_col, b_col)
    return out.reshape(N, C, H, W)


# ------------------------------- Transforms --------------------------------

class ChannelAffine:
    """Base: per-channel affine map  y[:, c] = x[:, c] * a[c] + b[c].
    Compose folds consecutive ChannelAffine transforms into ONE kernel call."""

    def coeffs(self, num_channels):
        raise NotImplementedError

    def __call__(self, data, label):
        if data is None:
            return data, label
        a, b = self.coeffs(data.shape[1])
        return _apply_channel_affine(data, a, b), label


class Scale(ChannelAffine):
    """data -> data * factor ; label unchanged."""

    def __init__(self, factor: float):
        self.factor = float(factor)

    def coeffs(self, num_channels):
        a = jnp.full((num_channels,), self.factor, jnp.float32)
        b = jnp.zeros((num_channels,), jnp.float32)
        return a, b


class Normalize(ChannelAffine):
    """Per-channel (data - mean) / std ; label unchanged."""

    def __init__(self, mean, std):
        self.mean = jnp.asarray(mean, jnp.float32)   # (C,)
        self.std = jnp.asarray(std, jnp.float32)     # (C,)

    def coeffs(self, num_channels):
        inv = 1.0 / self.std
        return inv, -self.mean * inv


# -------------------------------- Compose ----------------------------------

class Compose:
    """Port of datas/transforms.Compose.forward.

    Semantics match the reference module (sequential application guarded by
    `data is not None`).  Runs of consecutive per-channel affine transforms
    are folded at trace time — in slope/intercept form, so zero scales stay
    exact — into a single fused Pallas kernel, and the whole pipeline is
    traced under one jax.jit.
    """

    def __init__(self, transforms):
        self.transforms = list(transforms)
        self._jitted = jax.jit(self._forward)

    def _forward(self, data, label):
        pending = None  # running (a, b): y = x * a + b, each (C,) f32
        for transform in self.transforms:
            if data is None:
                continue
            if isinstance(transform, ChannelAffine):
                a, b = transform.coeffs(data.shape[1])
                if pending is None:
                    pending = (a, b)
                else:
                    pa, pb = pending
                    # (x*pa + pb)*a + b == x*(pa*a) + (pb*a + b)   (no division)
                    pending = (pa * a, pb * a + b)
                # label unchanged by affine transforms
            else:
                # TODO(synk): non-affine transforms run individually (unfused).
                if pending is not None:
                    data = _apply_channel_affine(data, *pending)
                    pending = None
                data, label = transform(data, label)
        if data is not None and pending is not None:
            data = _apply_channel_affine(data, *pending)
        return (data, label)

    def __call__(self, data, label):
        if data is None:
            # Faithful to the reference: with data None no transform runs.
            return (data, label)
        return self._jitted(data, label)


# ---------------------------------- main ------------------------------------

if __name__ == "__main__":
    key = jax.random.PRNGKey(0)
    k_data, k_label, k_data2 = jax.random.split(key, 3)

    N, C, H, W = 2, 4, 16, 16
    data = jax.random.normal(k_data, (N, C, H, W), dtype=jnp.float32)
    label = jax.random.randint(k_label, (N,), 0, 10, dtype=jnp.int32)

    # Deterministic transform parameters.
    mean = np.array([0.1, -0.2, 0.3, 0.0], dtype=np.float32)
    std = np.array([1.0, 2.0, 0.5, 1.5], dtype=np.float32)

    pipeline = Compose([Scale(2.0), Normalize(mean, std)])

    out_data, out_label = pipeline(data, label)
    out_data = jax.block_until_ready(out_data)
    out_label = jax.block_until_ready(out_label)

    # Pure-JAX reference with the original (unfused) semantics.
    ref = data * 2.0
    ref = (ref - mean.reshape(1, C, 1, 1)) / std.reshape(1, C, 1, 1)
    assert out_data.shape == (N, C, H, W)
    assert out_label.shape == (N,)
    np.testing.assert_allclose(np.asarray(out_data), np.asarray(ref),
                               rtol=1e-5, atol=1e-6)
    np.testing.assert_array_equal(np.asarray(out_label), np.asarray(label))

    # Standalone transform (single kernel call) sanity check.
    solo_data, solo_label = Normalize(mean, std)(data, label)
    solo_data = jax.block_until_ready(solo_data)
    np.testing.assert_allclose(
        np.asarray(solo_data),
        np.asarray((data - mean.reshape(1, C, 1, 1)) / std.reshape(1, C, 1, 1)),
        rtol=1e-5, atol=1e-6)
    np.testing.assert_array_equal(np.asarray(solo_label), np.asarray(label))

    # Zero-scale folding stays exact (slope/intercept fold, no division).
    zero_data, _ = Compose([Scale(0.0), Normalize(mean, std)])(data, label)
    zero_data = jax.block_until_ready(zero_data)
    zero_ref = (jnp.zeros_like(data) - mean.reshape(1, C, 1, 1)) / std.reshape(1, C, 1, 1)
    np.testing.assert_allclose(np.asarray(zero_data), np.asarray(zero_ref),
                               rtol=1e-5, atol=1e-6)

    # Multi-block grid with a ragged row edge (forced tiny per-block budget):
    # rows = N2*C2 = 20 -> 8-row tiles, grid (3, 1), masked last block.
    N2, C2, H2, W2 = 5, 4, 16, 24
    data2 = jax.random.normal(k_data2, (N2, C2, H2, W2), dtype=jnp.float32)
    a2 = jnp.asarray(1.0 / std, jnp.float32)
    b2 = jnp.asarray(-mean / std, jnp.float32)
    out2 = jax.block_until_ready(
        _apply_channel_affine(data2, a2, b2, block_budget=16 * 1024))
    ref2 = (data2 - mean.reshape(1, C2, 1, 1)) / std.reshape(1, C2, 1, 1)
    np.testing.assert_allclose(np.asarray(out2), np.asarray(ref2),
                               rtol=1e-5, atol=1e-6)

    # Exercise the `data is None` branch of Compose.forward.
    none_data, none_label = pipeline(None, label)
    assert none_data is None

    print("KERNEL_OK")
</pallas_src>

<mosaic_0001>
module attributes {stable_mosaic.version = 11 : i64} {
  func.func @_affine_kernel(%arg0: i32, %arg1: i32, %arg2: memref<8x256xf32, #tpu.memory_space<vmem>>, %arg3: memref<8x1xf32, #tpu.memory_space<vmem>>, %arg4: memref<8x1xf32, #tpu.memory_space<vmem>>, %arg5: memref<8x256xf32, #tpu.memory_space<vmem>>) attributes {dimension_semantics = [#tpu.dimension_semantics<parallel>, #tpu.dimension_semantics<parallel>], iteration_bounds = array<i64: 1, 1>, scalar_prefetch = 0 : i64, scratch_operands = 0 : i64, tpu.core_type = #tpu.core_type<tc>, window_params = [{transform_indices = @transform_0, window_bounds = array<i64: 8, 256>}, {transform_indices = @transform_1, window_bounds = array<i64: 8, 1>}, {transform_indices = @transform_2, window_bounds = array<i64: 8, 1>}, {transform_indices = @transform_3, window_bounds = array<i64: 8, 256>}]} {
    %c0 = arith.constant 0 : index
    %c0_0 = arith.constant 0 : index
    %0 = vector.load %arg2[%c0, %c0_0] : memref<8x256xf32, #tpu.memory_space<vmem>>, vector<8x256xf32>
    %c0_1 = arith.constant 0 : index
    %c0_2 = arith.constant 0 : index
    %1 = vector.load %arg3[%c0_1, %c0_2] : memref<8x1xf32, #tpu.memory_space<vmem>>, vector<8x1xf32>
    %2 = vector.broadcast %1 : vector<8x1xf32> to vector<8x256xf32>
    %3 = arith.mulf %0, %2 : vector<8x256xf32>
    %c0_3 = arith.constant 0 : index
    %c0_4 = arith.constant 0 : index
    %4 = vector.load %arg4[%c0_3, %c0_4] : memref<8x1xf32, #tpu.memory_space<vmem>>, vector<8x1xf32>
    %5 = vector.broadcast %4 : vector<8x1xf32> to vector<8x256xf32>
    %6 = arith.addf %3, %5 : vector<8x256xf32>
    %c0_5 = arith.constant 0 : index
    %c0_6 = arith.constant 0 : index
    %7 = vector.load %arg5[%c0_5, %c0_6] : memref<8x256xf32, #tpu.memory_space<vmem>>, vector<8x256xf32>
    tpu.vector_store %arg5[%c0_5, %c0_6], %6 {strides = array<i32>} : memref<8x256xf32, #tpu.memory_space<vmem>>, vector<8x256xf32>,
    return
  }
  func.func @transform_0(%arg0: i32, %arg1: i32) -> (i32, i32) {
    %c0_i32 = arith.constant 0 : i32
    return %arg0, %arg1 : i32, i32
  }
  func.func @transform_1(%arg0: i32, %arg1: i32) -> (i32, i32) {
    %c0_i32 = arith.constant 0 : i32
    %c0_i32_0 = arith.constant 0 : i32
    return %arg0, %c0_i32 : i32, i32
  }
  func.func @transform_2(%arg0: i32, %arg1: i32) -> (i32, i32) {
    %c0_i32 = arith.constant 0 : i32
    %c0_i32_0 = arith.constant 0 : i32
    return %arg0, %c0_i32 : i32, i32
  }
  func.func @transform_3(%arg0: i32, %arg1: i32) -> (i32, i32) {
    %c0_i32 = arith.constant 0 : i32
    return %arg0, %arg1 : i32, i32
  }
}

</mosaic_0001>

<llo_original>
// kernel: _forward.1
$region0: #{_forward.1}
  #allocation0 [shape = 'u32[]', space=smem, size = 0x4, offset = 0x4, fixed_abs, tag = 'smem constant byte address 0x4 - core index']
  #allocation1 [shape = 'u32[144,128]{1,0:T(1,128)}', space=vmem, size = 0x12000, scoped, tag = 'internal scratch']
  %s0 = inlined_call_operand.vmem [shape: f32[8,256], index: 0, kind: input, shape index: {}]
  %s1 = inlined_call_operand.vmem [shape: f32[8,1], index: 1, kind: input, shape index: {}]
  %s2 = inlined_call_operand.vmem [shape: f32[8,1], index: 2, kind: input, shape index: {}]
  %s3 = inlined_call_operand.vmem [shape: f32[8,256], index: 3, kind: output, shape index: {}]
  %s4 = sld [smem:[#allocation0]]
  $region22: #{_forward.1} parent=0
    _
  %s6 = ssub.s32 1, %s4
  %s7 = scalar_select 0, %s6, %s4
  // Predicated region
  $region2: #{_forward.1} parent=0 // pred_check
    _
  $region3: #{_forward.1} parent=0 // pred_check_branch
    %9 = sbr.rel (0) target = $region5
  $region4: #{_forward.1} parent=0 // pred_region
    _
  $region5: #{_forward.1} parent=0 // pred_fallthru
    _
  // Predicated region
  $region6: #{_forward.1} parent=0 // pred_check
    _
  $region7: #{_forward.1} parent=0 // pred_check_branch
    %11 = sbr.rel (0) target = $region9
  $region8: #{_forward.1} parent=0 // pred_region
    _
  $region9: #{_forward.1} parent=0 // pred_fallthru
    _
  // Predicated region
  $region10: #{_forward.1} parent=0 // pred_check
    _
  $region11: #{_forward.1} parent=0 // pred_check_branch
    %13 = sbr.rel (0) target = $region13
  $region12: #{_forward.1} parent=0 // pred_region
    _
  $region13: #{_forward.1} parent=0 // pred_fallthru
    _
  %v14 = vld [vmem:[%s0] sm:$0xff]
  %v15 = vld [vmem:[%s0 + $0x8] sm:$0xff]
  %v16 = vld [vmem:[%s1] sm:$0xff]
  %18 = vset.pattern.permute.xlu0 0
  %19 = vperm.xlu0 %18, %v16
  %v20 = vpop.permute.xlu0 %19
  %v22 = vmul.f32 %v14, %v20
  %v23 = vmul.f32 %v15, %v20
  %v24 = vld [vmem:[%s2] sm:$0xff]
  %26 = vset.pattern.permute.xlu0 0
  %27 = vperm.xlu0 %26, %v24
  %v28 = vpop.permute.xlu0 %27
  %v30 = vadd.f32 %v22, %v28
  %v31 = vadd.f32 %v23, %v28
  %32 = vst [vmem:[%s3] sm:$0xff] %v30
  %33 = vst [vmem:[%s3 + $0x8] sm:$0xff] %v31
  // Predicated region
  $region14: #{_forward.1} parent=0 // pred_check
    _
  $region15: #{_forward.1} parent=0 // pred_check_branch
    %35 = sbr.rel (0) target = $region17
  $region16: #{_forward.1} parent=0 // pred_region
    _
  $region17: #{_forward.1} parent=0 // pred_fallthru
    _
  // Predicated region
  $region18: #{_forward.1} parent=0 // pred_check
    _
  $region19: #{_forward.1} parent=0 // pred_check_branch
    %37 = sbr.rel (0) target = $region21
  $region20: #{_forward.1} parent=0 // pred_region
    _
  $region21: #{_forward.1} parent=0 // pred_fallthru
    _

</llo_original>
